<compile_context>
chip_gen: v6e
topology: v6e:2x2x1
jax: 0.10.0
libtpu: 0.0.40
codegen_flags: <defaults>
</compile_context>

<pallas_src>
import math
from functools import partial

import jax
import jax.numpy as jnp
from jax.experimental import pallas as pl
from jax.experimental.pallas import tpu as pltpu


def _pick_tile(n, candidates):
    """Largest candidate that evenly divides n, else the full extent."""
    for t in candidates:
        if t <= n and n % t == 0:
            return t
    return n


# ---------------------------------------------------------------------------
# 1x1 conv == per-pixel matmul over channels, tiled over spatial rows.
# Used only for the (bias-free) qkv projection; to_out is fused into the
# attention kernel below.
# ---------------------------------------------------------------------------
def _pw_conv_kernel(x_ref, w_ref, o_ref):
    y = jnp.dot(x_ref[0], w_ref[...], preferred_element_type=jnp.float32)
    o_ref[0] = y.astype(o_ref.dtype)


def pointwise_conv(x_bnc, w, tn=512):
    B, N, Cin = x_bnc.shape
    Cout = w.shape[1]
    tn = _pick_tile(N, (tn, 256, 128, 64, 32, 16, 8))

    return pl.pallas_call(
        _pw_conv_kernel,
        out_shape=jax.ShapeDtypeStruct((B, N, Cout), x_bnc.dtype),
        grid=(B, N // tn),
        in_specs=[
            pl.BlockSpec((1, tn, Cin), lambda b, n: (b, n, 0)),
            pl.BlockSpec((Cin, Cout), lambda b, n: (0, 0)),
        ],
        out_specs=pl.BlockSpec((1, tn, Cout), lambda b, n: (b, n, 0)),
        compiler_params=pltpu.CompilerParams(
            dimension_semantics=("parallel", "parallel")),
    )(x_bnc, w)


# ---------------------------------------------------------------------------
# Flash-style multi-head spatial attention, fused with the to_out projection.
#
# Inputs are channel slices of the fused qkv activation (B, N, 3*hidden)
# (scale already folded into the q columns of w_qkv):
#   q block : (1, tq, hidden) at channel-block 0   (resident across kv axis)
#   k block : (1, tk, hidden) at channel-block 1
#   v block : (1, tk, hidden) at channel-block 2
# Running softmax state is head-major VMEM scratch. On the last kv step the
# heads are interleaved once, projected through w_out (+ bias), and written
# channel-major as a (1, C, tq) block of the (B, C, N) output.
# ---------------------------------------------------------------------------
def _flash_attn_out_kernel(q_ref, k_ref, v_ref, w_out_ref, b_out_ref, o_ref,
                           q_sc, m_sc, l_sc, acc_sc, *, heads, dim_head):
    ki = pl.program_id(2)

    @pl.when(ki == 0)
    def _init():
        # q block is resident across the kv axis: cast it to bf16 (head-major)
        # exactly once per q tile.
        q = q_ref[0]                                              # (tq, hidden)
        for h in range(heads):
            q_sc[h] = q[:, h * dim_head:(h + 1) * dim_head].astype(jnp.bfloat16)
        m_sc[...] = jnp.full(m_sc.shape, -jnp.inf, m_sc.dtype)
        l_sc[...] = jnp.zeros(l_sc.shape, l_sc.dtype)
        acc_sc[...] = jnp.zeros(acc_sc.shape, acc_sc.dtype)

    k = k_ref[0].astype(jnp.bfloat16)                             # (tk, hidden)
    v = v_ref[0].astype(jnp.bfloat16)                             # (tk, hidden)

    for h in range(heads):
        sl = slice(h * dim_head, (h + 1) * dim_head)
        # sim[i, j] = sum_d q[i, d] * k[j, d]  (bf16 operands, f32 accumulate)
        sim = jax.lax.dot_general(
            q_sc[h], k[:, sl],
            dimension_numbers=(((1,), (1,)), ((), ())),
            preferred_element_type=jnp.float32)                   # (tq, tk) f32

        m_prev = m_sc[h]                                          # (tq, 1)
        m_new = jnp.maximum(m_prev, jnp.max(sim, axis=-1, keepdims=True))
        alpha = jnp.exp(m_prev - m_new)
        p = jnp.exp(sim - m_new)                                  # f32 softmax math

        l_sc[h] = alpha * l_sc[h] + jnp.sum(p, axis=-1, keepdims=True)
        acc_sc[h] = alpha * acc_sc[h] + jnp.dot(
            p.astype(jnp.bfloat16), v[:, sl],
            preferred_element_type=jnp.float32)
        m_sc[h] = m_new

    @pl.when(ki == pl.num_programs(2) - 1)
    def _finalize():
        # Normalize per head, interleave heads once into (tq, hidden), apply
        # the to_out projection + bias, and store channel-major (C, tq)
        # (lane-dense along the spatial axis).
        outs = [acc_sc[h] / l_sc[h] for h in range(heads)]        # exact recip
        attn = jnp.concatenate(outs, axis=-1)                     # (tq, hidden)
        y = jax.lax.dot_general(
            w_out_ref[...], attn,
            dimension_numbers=(((0,), (1,)), ((), ())),
            preferred_element_type=jnp.float32)                   # (C, tq)
        o_ref[0] = (y + b_out_ref[...]).astype(o_ref.dtype)


def flash_attention_to_out(qkv, w_out, b_out, heads, dim_head, tq=None, tk=None):
    B, N, C3 = qkv.shape
    hidden = heads * dim_head
    assert C3 == 3 * hidden
    Cout = w_out.shape[1]

    if tq is None:
        tq = _pick_tile(N, (128, 64, 32, 16, 8))
    if tk is None:
        # Big kv tiles amortize per-step overhead and acc rescales; the 2048
        # cap keeps double-buffered k+v blocks ~4 MiB (safe on v7x's 32 MiB
        # scoped VMEM) while giving full K/V residency for typical diffusion N.
        tk = _pick_tile(N, (2048, 1024, 512, 256, 128, 64, 32, 16, 8))

    q_spec = pl.BlockSpec((1, tq, hidden), lambda b, qi, ki: (b, qi, 0))
    k_spec = pl.BlockSpec((1, tk, hidden), lambda b, qi, ki: (b, ki, 1))
    v_spec = pl.BlockSpec((1, tk, hidden), lambda b, qi, ki: (b, ki, 2))
    w_spec = pl.BlockSpec((hidden, Cout), lambda b, qi, ki: (0, 0))
    b_spec = pl.BlockSpec((Cout, 1), lambda b, qi, ki: (0, 0))
    o_spec = pl.BlockSpec((1, Cout, tq), lambda b, qi, ki: (b, 0, qi))

    kernel = partial(_flash_attn_out_kernel, heads=heads, dim_head=dim_head)

    return pl.pallas_call(
        kernel,
        out_shape=jax.ShapeDtypeStruct((B, Cout, N), qkv.dtype),
        grid=(B, N // tq, N // tk),
        in_specs=[q_spec, k_spec, v_spec, w_spec, b_spec],
        out_specs=o_spec,
        scratch_shapes=[
            pltpu.VMEM((heads, tq, dim_head), jnp.bfloat16),  # resident scaled q
            pltpu.VMEM((heads, tq, 1), jnp.float32),          # running max
            pltpu.VMEM((heads, tq, 1), jnp.float32),          # running sum
            pltpu.VMEM((heads, tq, dim_head), jnp.float32),   # output accumulator
        ],
        compiler_params=pltpu.CompilerParams(
            dimension_semantics=("parallel", "parallel", "arbitrary")),
    )(qkv, qkv, qkv, w_out, b_out)


# ---------------------------------------------------------------------------
# Full module forward (PyTorch NCHW in / NCHW out).
# ---------------------------------------------------------------------------
def attention_forward(x_nchw, params, heads=4, dim_head=32, tq=None, tk=None):
    b, c, h, w = x_nchw.shape
    n = h * w
    hidden = heads * dim_head
    scale = dim_head ** -0.5

    # NCHW -> (B, N, C)   (boundary layout change only)
    x_bnc = jnp.transpose(x_nchw, (0, 2, 3, 1)).reshape(b, n, c)

    # Fold the softmax scale into the q-chunk columns of w_qkv (once, outside
    # the kernel) so the flash kernel never rescales q.
    w_qkv = params["w_qkv"].at[:, :hidden].multiply(scale)

    # to_qkv (1x1 conv, no bias). Channel order [q | k | v], each (head, dim_head).
    qkv = pointwise_conv(x_bnc, w_qkv)                            # (b, n, 3*hidden)

    # Fused flash attention + to_out projection (+ bias). Output is written
    # channel-major (b, c, n) -> final NCHW layout is just a reshape.
    y_bcn = flash_attention_to_out(
        qkv, params["w_out"], params["b_out"].reshape(c, 1),
        heads=heads, dim_head=dim_head, tq=tq, tk=tk)

    return y_bcn.reshape(b, c, h, w)


# ---------------------------------------------------------------------------
# Plain-JAX reference (mirrors the PyTorch einsum semantics).
# ---------------------------------------------------------------------------
def attention_reference(x, params, heads=4, dim_head=32):
    b, c, h, w = x.shape
    n = h * w
    hidden = heads * dim_head
    scale = dim_head ** -0.5
    xf = x.reshape(b, c, n)
    qkv = jnp.einsum("co,bcn->bon", params["w_qkv"], xf)
    q, k, v = (t.reshape(b, heads, dim_head, n)
               for t in jnp.split(qkv, 3, axis=1))
    q = q * scale
    sim = jnp.einsum("bhdi,bhdj->bhij", q, k)
    attn = jax.nn.softmax(sim, axis=-1)
    out = jnp.einsum("bhij,bhdj->bhid", attn, v)
    out = jnp.transpose(out, (0, 1, 3, 2)).reshape(b, hidden, n)
    y = jnp.einsum("io,bin->bon", params["w_out"], out)
    y = y + params["b_out"].reshape(1, c, 1)
    return y.reshape(b, c, h, w)


if __name__ == "__main__":
    B, dim, H, W = 2, 32, 16, 16
    heads, dim_head = 4, 32
    hidden = heads * dim_head

    key = jax.random.PRNGKey(0)
    k1, k2, k3, k4 = jax.random.split(key, 4)
    params = {
        # stored as (C_in, C_out): transpose of torch Conv2d weight[:, :, 0, 0]
        "w_qkv": jax.random.normal(k1, (dim, 3 * hidden), jnp.float32) / math.sqrt(dim),
        "w_out": jax.random.normal(k2, (hidden, dim), jnp.float32) / math.sqrt(hidden),
        "b_out": jax.random.normal(k3, (1, dim), jnp.float32) * 0.01,
    }
    x = jax.random.normal(k4, (B, dim, H, W), jnp.float32)

    y_ref = attention_reference(x, params, heads=heads, dim_head=dim_head)

    # Default tiling: tq=128, kv extent fully resident per q tile.
    y = attention_forward(x, params, heads=heads, dim_head=dim_head)
    y = jax.block_until_ready(y)
    assert y.shape == (B, dim, H, W)
    err = float(jnp.abs(y - y_ref).max())
    # bf16 MXU operands -> slightly looser tolerance
    assert jnp.allclose(y, y_ref, atol=2e-2, rtol=2e-2), err

    # Smaller kv tile: exercises the multi-step online-softmax accumulation path.
    y2 = attention_forward(x, params, heads=heads, dim_head=dim_head, tq=128, tk=128)
    y2 = jax.block_until_ready(y2)
    err2 = float(jnp.abs(y2 - y_ref).max())
    assert jnp.allclose(y2, y_ref, atol=2e-2, rtol=2e-2), err2

    print("KERNEL_OK")
</pallas_src>

<mosaic_0001>
module attributes {stable_mosaic.version = 11 : i64} {
  func.func @_pw_conv_kernel(%arg0: i32, %arg1: i32, %arg2: memref<1x256x32xf32, #tpu.memory_space<vmem>>, %arg3: memref<32x384xf32, #tpu.memory_space<vmem>>, %arg4: memref<1x256x384xf32, #tpu.memory_space<vmem>>) attributes {dimension_semantics = [#tpu.dimension_semantics<parallel>, #tpu.dimension_semantics<parallel>], iteration_bounds = array<i64: 2, 1>, scalar_prefetch = 0 : i64, scratch_operands = 0 : i64, tpu.core_type = #tpu.core_type<tc>, window_params = [{transform_indices = @transform_0, window_bounds = array<i64: 1, 256, 32>}, {pipeline_mode = #tpu.pipeline_mode<synchronous>, transform_indices = @transform_1, window_bounds = array<i64: 32, 384>}, {transform_indices = @transform_2, window_bounds = array<i64: 1, 256, 384>}]} {
    %c0 = arith.constant 0 : index
    %c0_0 = arith.constant 0 : index
    %c0_1 = arith.constant 0 : index
    %0 = vector.load %arg2[%c0, %c0_0, %c0_1] : memref<1x256x32xf32, #tpu.memory_space<vmem>>, vector<1x256x32xf32>
    %1 = vector.shape_cast %0 : vector<1x256x32xf32> to vector<256x32xf32>
    %c0_2 = arith.constant 0 : index
    %c0_3 = arith.constant 0 : index
    %2 = vector.load %arg3[%c0_2, %c0_3] : memref<32x384xf32, #tpu.memory_space<vmem>>, vector<32x384xf32>
    %cst = arith.constant dense<0.000000e+00> : vector<256x384xf32>
    %3 = tpu.matmul %1, %2, %cst {dimension_numbers = #tpu.dot_dimension_numbers<[1], [0], [0], [1], [0, 0, 1, 1], [], []>} : vector<256x32xf32>, vector<32x384xf32>, vector<256x384xf32> -> vector<256x384xf32>
    %c0_4 = arith.constant 0 : index
    %c0_5 = arith.constant 0 : index
    %c0_6 = arith.constant 0 : index
    %4 = vector.load %arg4[%c0_4, %c0_5, %c0_6] : memref<1x256x384xf32, #tpu.memory_space<vmem>>, vector<1x256x384xf32>
    %5 = vector.shape_cast %4 : vector<1x256x384xf32> to vector<256x384xf32>
    %6 = vector.shape_cast %3 : vector<256x384xf32> to vector<1x256x384xf32>
    tpu.vector_store %arg4[%c0_4, %c0_5, %c0_6], %6 {strides = array<i32>} : memref<1x256x384xf32, #tpu.memory_space<vmem>>, vector<1x256x384xf32>,
    return
  }
  func.func @transform_0(%arg0: i32, %arg1: i32) -> (i32, i32, i32) {
    %c0_i32 = arith.constant 0 : i32
    %c0_i32_0 = arith.constant 0 : i32
    return %arg0, %arg1, %c0_i32 : i32, i32, i32
  }
  func.func @transform_1(%arg0: i32, %arg1: i32) -> (i32, i32) {
    %c0_i32 = arith.constant 0 : i32
    %c0_i32_0 = arith.constant 0 : i32
    %c0_i32_1 = arith.constant 0 : i32
    return %c0_i32, %c0_i32_0 : i32, i32
  }
  func.func @transform_2(%arg0: i32, %arg1: i32) -> (i32, i32, i32) {
    %c0_i32 = arith.constant 0 : i32
    %c0_i32_0 = arith.constant 0 : i32
    return %arg0, %arg1, %c0_i32 : i32, i32, i32
  }
}

</mosaic_0001>

<llo_original>
// kernel: tpu_custom_call.1
$region0: #{tpu_custom_call.1}
  #allocation0 [shape = 'u32[]', space=smem, size = 0x4, offset = 0x4, fixed_abs, tag = 'smem constant byte address 0x4 - core index']
  #allocation1 [shape = 'u32[144,128]{1,0:T(1,128)}', space=vmem, size = 0x12000, scoped, tag = 'internal scratch']
  %s0 = inlined_call_operand.vmem [shape: f32[2,256,32], index: 0, kind: input, shape index: {}]
  %s1 = inlined_call_operand.vmem [shape: f32[32,384], index: 1, kind: input, shape index: {}]
  %s2 = inlined_call_operand.hbm [shape: f32[2,256,384], index: 2, kind: output, shape index: {}]
  %s3 = sld [smem:[#allocation0]]
  $region41: #{tpu_custom_call.1} parent=0
    _
  %s5 = ssub.s32 1, %s3
  %s6 = scalar_select 0, %s5, %s3
  $region1: #{tpu_custom_call.1} parent=0
    #allocation2 [shape = 'u8[786432]{0}', space=vmem, size = 0xc0000, scoped, tag = 'output window, operand 0']
    #allocation3 [shape = 's32[2]{0}', space=sflag, size = 0x8, scoped, tag = 'scoped memory for tpu_custom_call.1']
    %7 = vsyncpa [#allocation3], 0
    %s8 = scalar_lea.sflag [#allocation3], 1
    %9 = vsyncpa %s8, 0
    loop: start=0, step=1, limit=4
    $region2: #{tpu_custom_call.1} parent=1 // loop_pre_header
      _
    $region3: #{tpu_custom_call.1} parent=1 // loop_header
      %s11 = sphi 0, %s15
      %p12 = scmp.ge.s32.totalorder %s11, 4
      %s18 = sphi 0, %s30
      %s19 = sphi 0, %s26
      %s20 = sphi 0, %s18
      %s21 = sphi 0, %s19
      %s22 = sphi 0, %s20
      %s23 = sphi 0, %s21
      %s35 = sphi 0, %s37
      %s38 = sphi 0, %s35
      %s39 = sphi 0, %s38
      %s55 = sphi 0, %s39
      %s59 = sphi 0, %s59
      %s61 = sphi 0, %s59
      %s62 = sphi 0, %s61
      %s76 = sphi 0, %s62
      %s84 = sphi 0, %s86
      %s87 = sphi 0, %s84
      %s88 = sphi 0, %s87
      %s104 = sphi 0, %s88
    $region4: #{tpu_custom_call.1} parent=1 // loop_header_branch
      %14 = sbr.rel (%p12) target = $region8
    $region5: #{tpu_custom_call.1} parent=1 // loop_body
      %s16 = ssub.s32 %s11, 1
      %s17 = ssub.s32 %s11, 2
      %s24 = sadd.s32 1, %s19
      %p25 = scmp.ge.s32.totalorder %s24, 1
      %s26 = scalar_select %p25, 0, %s24
      %s27 = sadd.s32 1, %s18
      %s28 = scalar_select %p25, %s27, %s18
      %p29 = scmp.ge.s32.totalorder %s28, 2
      %s30 = scalar_select %p29, 0, %s28
      %s31 = ssub.s32 %s18, %s30
      %s32 = ssub.s32 %s19, %s26
      %s33 = sor.u32 %s31, %s32
      %p34 = scmp.eq.s32.totalorder %s33, 0
      %s36 = sadd.s32 %s35, 1
      %s37 = scalar_select %p34, %s35, %s36
      %p40 = pneg %p34
      %p41 = scmp.eq.s32.totalorder %s11, 1
      %p42 = por %p40, %p41
      %p43 = scmp.ne.s32.totalorder %s35, %s38
      %p44 = scmp.eq.s32.totalorder %s11, 0
      %p45 = por %p43, %p44
      %p46 = scmp.ne.s32.totalorder %s35, %s38
      %p47 = scmp.eq.s32.totalorder %s16, 1
      %p48 = por %p46, %p47
      %p49 = scmp.ne.s32.totalorder %s38, %s39
      %p50 = scmp.eq.s32.totalorder %s16, 0
      %p51 = por %p49, %p50
      %p52 = scmp.ne.s32.totalorder %s38, %s39
      %p53 = scmp.eq.s32.totalorder %s17, 1
      %p54 = por %p52, %p53
      %p56 = scmp.ne.s32.totalorder %s39, %s55
      %p57 = scmp.eq.s32.totalorder %s17, 0
      %p58 = por %p56, %p57
      %s60 = sadd.s32 %s59, 1
      %p63 = scmp.eq.s32.totalorder %s11, 1
      %p64 = scmp.ne.s32.totalorder %s59, %s61
      %p65 = scmp.eq.s32.totalorder %s11, 0
      %p66 = por %p64, %p65
      %p67 = scmp.ne.s32.totalorder %s59, %s61
      %p68 = scmp.eq.s32.totalorder %s16, 1
      %p69 = por %p67, %p68
      %p70 = scmp.ne.s32.totalorder %s61, %s62
      %p71 = scmp.eq.s32.totalorder %s16, 0
      %p72 = por %p70, %p71
      %p73 = scmp.ne.s32.totalorder %s61, %s62
      %p74 = scmp.eq.s32.totalorder %s17, 1
      %p75 = por %p73, %p74
      %p77 = scmp.ne.s32.totalorder %s62, %s76
      %p78 = scmp.eq.s32.totalorder %s17, 0
      %p79 = por %p77, %p78
      %s80 = ssub.s32 %s18, %s30
      %s81 = ssub.s32 %s19, %s26
      %s82 = sor.u32 %s80, %s81
      %p83 = scmp.eq.s32.totalorder %s82, 0
      %s85 = sadd.s32 %s84, 1
      %s86 = scalar_select %p83, %s84, %s85
      %p89 = pneg %p83
      %p90 = scmp.eq.s32.totalorder %s11, 1
      %p91 = por %p89, %p90
      %p92 = scmp.ne.s32.totalorder %s84, %s87
      %p93 = scmp.eq.s32.totalorder %s11, 0
      %p94 = por %p92, %p93
      %p95 = scmp.ne.s32.totalorder %s84, %s87
      %p96 = scmp.eq.s32.totalorder %s16, 1
      %p97 = por %p95, %p96
      %p98 = scmp.ne.s32.totalorder %s87, %s88
      %p99 = scmp.eq.s32.totalorder %s16, 0
      %p100 = por %p98, %p99
      %p101 = scmp.ne.s32.totalorder %s87, %s88
      %p102 = scmp.eq.s32.totalorder %s17, 1
      %p103 = por %p101, %p102
      %p105 = scmp.ne.s32.totalorder %s88, %s104
      %p106 = scmp.eq.s32.totalorder %s17, 0
      %p107 = por %p105, %p106
      %p108 = scmp.le.s32.totalorder 1, %s11
      %p109 = scmp.lt.s32.totalorder %s11, 3
      %p110 = pnand %p108, %p109
      %p111 = pneg %p110
      // Predicated region
      $region9: #{tpu_custom_call.1} parent=5 // pred_check
        _
      $region10: #{tpu_custom_call.1} parent=5 // pred_check_branch
        %113 = sbr.rel (%p110) target = $region12
      $region11: #{tpu_custom_call.1} parent=5 // pred_region
        %s114 = ssub.s32 %s11, 1
        // Predicated region
        $region13: #{tpu_custom_call.1} parent=11 // pred_check
          %p115 = pneg %p72
        $region14: #{tpu_custom_call.1} parent=11 // pred_check_branch
          %117 = sbr.rel (%p115) target = $region16
        $region15: #{tpu_custom_call.1} parent=11 // pred_region
          _
        $region16: #{tpu_custom_call.1} parent=11 // pred_fallthru
          _
      $region12: #{tpu_custom_call.1} parent=5 // pred_fallthru
        _
      %p118 = scmp.lt.s32.totalorder %s11, 2
      // Predicated region
      $region17: #{tpu_custom_call.1} parent=5 // pred_check
        %p119 = pneg %p118
      $region18: #{tpu_custom_call.1} parent=5 // pred_check_branch
        %121 = sbr.rel (%p119) target = $region20
      $region19: #{tpu_custom_call.1} parent=5 // pred_region
        // Predicated region
        $region21: #{tpu_custom_call.1} parent=19 // pred_check
          %p122 = pneg %p45
        $region22: #{tpu_custom_call.1} parent=19 // pred_check_branch
          %124 = sbr.rel (%p122) target = $region24
        $region23: #{tpu_custom_call.1} parent=19 // pred_region
          %s125 = smul.u32 32, %s19
          %p126 = scmp.lt.s32.totalorder %s18, 1
          %s127 = scalar_select %p126, %s18, 1
          %p128 = scmp.lt.s32.totalorder %s125, 31
          %s129 = scalar_select %p128, %s125, 31
          %s130 = smul.addr %s127, 32
          %s131 = sadd.s32 %s129, %s130
          %s132 = smul.addr %s131, 8
          %s133 = scalar_lea.vmem %s0, %s132
          %s134 = smul.u32 32, %s19
        $region24: #{tpu_custom_call.1} parent=19 // pred_fallthru
          _
      $region20: #{tpu_custom_call.1} parent=5 // pred_fallthru
        _
      %p135 = scmp.le.s32.totalorder 1, %s11
      %p136 = scmp.lt.s32.totalorder %s11, 3
      %p137 = pnand %p135, %p136
      %p138 = pneg %p137
      // Predicated region
      $region25: #{tpu_custom_call.1} parent=5 // pred_check
        _
      $region26: #{tpu_custom_call.1} parent=5 // pred_check_branch
        %140 = sbr.rel (%p137) target = $region28
      $region27: #{tpu_custom_call.1} parent=5 // pred_region
        %s141 = ssub.s32 %s11, 1
        %s142 = smul.u32 32, %s21
        %p143 = scmp.lt.s32.totalorder %s20, 1
        %s144 = scalar_select %p143, %s20, 1
        %p145 = scmp.lt.s32.totalorder %s142, 31
        %s146 = scalar_select %p145, %s142, 31
        %s147 = smul.addr %s144, 32
        %s148 = sadd.s32 %s146, %s147
        %s149 = smul.addr %s148, 8
        %s150 = scalar_lea.vmem %s0, %s149
        %p151 = pneg %p51
        %p152 = pneg %p48
        %p153 = pneg %p72
        %p154 = pneg %p69
        %p155 = pneg %p100
        %p156 = pneg %p97
        %s157 = sand.u32 %s87, 1
        %s158 = scalar_lea.sflag [#allocation3], %s157
        %s159 = sand.u32 %s87, 1
        %s160 = smul.addr %s159, 768
        %s161 = scalar_lea.vmem [#allocation2], %s160
        %s162 = smul.u32 32, %s21
        %p163 = scmp.lt.s32.totalorder %s20, 1
        %s164 = scalar_select %p163, %s20, 1
        %p165 = scmp.lt.s32.totalorder %s162, 31
        %s166 = scalar_select %p165, %s162, 31
        %s167 = smul.addr %s164, 32
        %s168 = sadd.s32 %s166, %s167
        %s169 = smul.addr %s168, 8
        %s170 = scalar_lea.vmem %s0, %s169
        %s171 = smul.u32 32, %s21
        %s172 = smul.u32 32, %s21
        %v173 = vld [vmem:[%s170] sm:$0xff]
        %v174 = vld [vmem:[%s170 + $0x8] sm:$0xff]
        %v175 = vld [vmem:[%s170 + $0x10] sm:$0xff]
        %v176 = vld [vmem:[%s170 + $0x18] sm:$0xff]
        %v177 = vld [vmem:[%s170 + $0x20] sm:$0xff]
        %v178 = vld [vmem:[%s170 + $0x28] sm:$0xff]
        %v179 = vld [vmem:[%s170 + $0x30] sm:$0xff]
        %v180 = vld [vmem:[%s170 + $0x38] sm:$0xff]
        %v181 = vld [vmem:[%s170 + $0x40] sm:$0xff]
        %v182 = vld [vmem:[%s170 + $0x48] sm:$0xff]
        %v183 = vld [vmem:[%s170 + $0x50] sm:$0xff]
        %v184 = vld [vmem:[%s170 + $0x58] sm:$0xff]
        %v185 = vld [vmem:[%s170 + $0x60] sm:$0xff]
        %v186 = vld [vmem:[%s170 + $0x68] sm:$0xff]
        %v187 = vld [vmem:[%s170 + $0x70] sm:$0xff]
        %v188 = vld [vmem:[%s170 + $0x78] sm:$0xff]
        %v189 = vld [vmem:[%s170 + $0x80] sm:$0xff]
        %v190 = vld [vmem:[%s170 + $0x88] sm:$0xff]
        %v191 = vld [vmem:[%s170 + $0x90] sm:$0xff]
        %v192 = vld [vmem:[%s170 + $0x98] sm:$0xff]
        %v193 = vld [vmem:[%s170 + $0xa0] sm:$0xff]
        %v194 = vld [vmem:[%s170 + $0xa8] sm:$0xff]
        %v195 = vld [vmem:[%s170 + $0xb0] sm:$0xff]
        %v196 = vld [vmem:[%s170 + $0xb8] sm:$0xff]
        %v197 = vld [vmem:[%s170 + $0xc0] sm:$0xff]
        %v198 = vld [vmem:[%s170 + $0xc8] sm:$0xff]
        %v199 = vld [vmem:[%s170 + $0xd0] sm:$0xff]
        %v200 = vld [vmem:[%s170 + $0xd8] sm:$0xff]
        %v201 = vld [vmem:[%s170 + $0xe0] sm:$0xff]
        %v202 = vld [vmem:[%s170 + $0xe8] sm:$0xff]
        %v203 = vld [vmem:[%s170 + $0xf0] sm:$0xff]
        %v204 = vld [vmem:[%s170 + $0xf8] sm:$0xff]
        %v205 = vld [vmem:[%s1] sm:$0xff]
        %v206 = vld [vmem:[%s1 + $0x8] sm:$0xff]
        %v207 = vld [vmem:[%s1 + $0x10] sm:$0xff]
        %v208 = vld [vmem:[%s1 + $0x18] sm:$0xff]
        %v209 = vld [vmem:[%s1 + $0x20] sm:$0xff]
        %v210 = vld [vmem:[%s1 + $0x28] sm:$0xff]
        %v211 = vld [vmem:[%s1 + $0x30] sm:$0xff]
        %v212 = vld [vmem:[%s1 + $0x38] sm:$0xff]
        %v213 = vld [vmem:[%s1 + $0x40] sm:$0xff]
        %v214 = vld [vmem:[%s1 + $0x48] sm:$0xff]
        %v215 = vld [vmem:[%s1 + $0x50] sm:$0xff]
        %v216 = vld [vmem:[%s1 + $0x58] sm:$0xff]
        %vm217 = vcmask 261120
        %v219 = vsel %vm217, %v173, 0
        %v222 = vsel %vm217, %v174, 0
        %v225 = vsel %vm217, %v175, 0
        %v228 = vsel %vm217, %v176, 0
        %v231 = vsel %vm217, %v177, 0
        %v234 = vsel %vm217, %v178, 0
        %v237 = vsel %vm217, %v179, 0
        %v240 = vsel %vm217, %v180, 0
        %v243 = vsel %vm217, %v181, 0
        %v246 = vsel %vm217, %v182, 0
        %v249 = vsel %vm217, %v183, 0
        %v252 = vsel %vm217, %v184, 0
        %v255 = vsel %vm217, %v185, 0
        %v258 = vsel %vm217, %v186, 0
        %v261 = vsel %vm217, %v187, 0
        %v264 = vsel %vm217, %v188, 0
        %v267 = vsel %vm217, %v189, 0
        %v270 = vsel %vm217, %v190, 0
        %v273 = vsel %vm217, %v191, 0
        %v276 = vsel %vm217, %v192, 0
        %v279 = vsel %vm217, %v193, 0
        %v282 = vsel %vm217, %v194, 0
        %v285 = vsel %vm217, %v195, 0
        %v288 = vsel %vm217, %v196, 0
        %v291 = vsel %vm217, %v197, 0
        %v294 = vsel %vm217, %v198, 0
        %v297 = vsel %vm217, %v199, 0
        %v300 = vsel %vm217, %v200, 0
        %v303 = vsel %vm217, %v201, 0
        %v306 = vsel %vm217, %v202, 0
        %v309 = vsel %vm217, %v203, 0
        %v312 = vsel %vm217, %v204, 0
        %314 = vmatprep.subr.mxu0 0.0
        %315 = vmatpush1.msra.mxu0 0.0
        %316 = vmatprep.subr.mxu0 0.0
        %317 = vmatpush1.msra.mxu0 0.0
        %318 = vmatprep.subr.mxu0 0.0
        %319 = vmatpush1.msra.mxu0 0.0
        %320 = vmatprep.subr.mxu0 0.0
        %321 = vmatpush1.msra.mxu0 0.0
        %322 = vmatprep.subr.mxu0 0.0
        %323 = vmatpush1.msra.mxu0 0.0
        %324 = vmatprep.subr.mxu0 0.0
        %325 = vmatpush1.msra.mxu0 0.0
        %326 = vmatprep.subr.mxu0 0.0
        %327 = vmatpush1.msra.mxu0 0.0
        %328 = vmatprep.subr.mxu0 0.0
        %329 = vmatpush1.msra.mxu0 0.0
        %330 = vmatprep.subr.mxu0 0.0
        %331 = vmatpush1.msra.mxu0 0.0
        %332 = vmatprep.subr.mxu0 0.0
        %333 = vmatpush1.msra.mxu0 0.0
        %334 = vmatprep.subr.mxu0 0.0
        %335 = vmatpush1.msra.mxu0 0.0
        %336 = vmatprep.subr.mxu0 0.0
        %337 = vmatpush1.msra.mxu0 0.0
        %338 = vmatprep.subr.mxu0 %v215
        %339 = vmatpush1.msra.mxu0 %v214
        %340 = vmatprep.subr.mxu0 %v212
        %341 = vmatpush1.msra.mxu0 %v211
        %342 = vmatprep.subr.mxu0 %v209
        %343 = vmatpush1.msra.mxu0 %v208
        %344 = vmatprep.subr.mxu0 %v206
        %345 = vmatpush1.msra.mxu0 %v205
        %346 = vmatprep.subr.mxu0 0.0
        %347 = vmatpush2.msra.mxu0 0.0
        %348 = vmatprep.subr.mxu0 0.0
        %349 = vmatpush2.msra.mxu0 0.0
        %350 = vmatprep.subr.mxu0 0.0
        %351 = vmatpush2.msra.mxu0 0.0
        %352 = vmatprep.subr.mxu0 0.0
        %353 = vmatpush2.msra.mxu0 0.0
        %354 = vmatprep.subr.mxu0 0.0
        %355 = vmatpush2.msra.mxu0 0.0
        %356 = vmatprep.subr.mxu0 0.0
        %357 = vmatpush2.msra.mxu0 0.0
        %358 = vmatprep.subr.mxu0 0.0
        %359 = vmatpush2.msra.mxu0 0.0
        %360 = vmatprep.subr.mxu0 0.0
        %361 = vmatpush2.msra.mxu0 0.0
        %362 = vmatprep.subr.mxu0 0.0
        %363 = vmatpush2.msra.mxu0 0.0
        %364 = vmatprep.subr.mxu0 0.0
        %365 = vmatpush2.msra.mxu0 0.0
        %366 = vmatprep.subr.mxu0 0.0
        %367 = vmatpush2.msra.mxu0 0.0
        %368 = vmatprep.subr.mxu0 0.0
        %369 = vmatpush2.msra.mxu0 0.0
        %370 = vmatprep.subr.mxu0 0.0
        %371 = vmatpush2.msra.mxu0 0.0
        %372 = vmatprep.subr.mxu0 0.0
        %373 = vmatpush2.msra.mxu0 0.0
        %374 = vmatprep.subr.mxu0 0.0
        %375 = vmatpush2.msra.mxu0 0.0
        %376 = vmatprep.subr.mxu0 0.0
        %377 = vmatpush2.msra.mxu0 0.0
        %378 = vmatprep.mubr.f32.mxu0 0.0
        %379 = vmatmul.mubr.f32.gmra.mxu0 %v219
        %v380 = vpop.f32.mrf.mxu0
        %v381 = vadd.f32 0.0, %v380
        %v382 = vpop.f32.mrf.mxu0
        %v383 = vadd.f32 0.0, %v382
        %384 = vmatprep.mubr.f32.mxu0 0.0
        %385 = vmatmul.mubr.f32.gmra.mxu0 %v222
        %v386 = vpop.f32.mrf.mxu0
        %v387 = vadd.f32 0.0, %v386
        %v388 = vpop.f32.mrf.mxu0
        %v389 = vadd.f32 0.0, %v388
        %390 = vmatprep.mubr.f32.mxu0 0.0
        %391 = vmatmul.mubr.f32.gmra.mxu0 %v225
        %v392 = vpop.f32.mrf.mxu0
        %v393 = vadd.f32 0.0, %v392
        %v394 = vpop.f32.mrf.mxu0
        %v395 = vadd.f32 0.0, %v394
        %396 = vmatprep.mubr.f32.mxu0 0.0
        %397 = vmatmul.mubr.f32.gmra.mxu0 %v228
        %v398 = vpop.f32.mrf.mxu0
        %v399 = vadd.f32 0.0, %v398
        %v400 = vpop.f32.mrf.mxu0
        %v401 = vadd.f32 0.0, %v400
        %402 = vmatprep.mubr.f32.mxu0 0.0
        %403 = vmatmul.mubr.f32.gmra.mxu0 %v231
        %v404 = vpop.f32.mrf.mxu0
        %v405 = vadd.f32 0.0, %v404
        %v406 = vpop.f32.mrf.mxu0
        %v407 = vadd.f32 0.0, %v406
        %408 = vmatprep.mubr.f32.mxu0 0.0
        %409 = vmatmul.mubr.f32.gmra.mxu0 %v234
        %v410 = vpop.f32.mrf.mxu0
        %v411 = vadd.f32 0.0, %v410
        %v412 = vpop.f32.mrf.mxu0
        %v413 = vadd.f32 0.0, %v412
        %414 = vmatprep.mubr.f32.mxu0 0.0
        %415 = vmatmul.mubr.f32.gmra.mxu0 %v237
        %v416 = vpop.f32.mrf.mxu0
        %v417 = vadd.f32 0.0, %v416
        %v418 = vpop.f32.mrf.mxu0
        %v419 = vadd.f32 0.0, %v418
        %420 = vmatprep.mubr.f32.mxu0 0.0
        %421 = vmatmul.mubr.f32.gmra.mxu0 %v240
        %v422 = vpop.f32.mrf.mxu0
        %v423 = vadd.f32 0.0, %v422
        %v424 = vpop.f32.mrf.mxu0
        %v425 = vadd.f32 0.0, %v424
        %426 = vmatprep.mubr.f32.mxu0 0.0
        %427 = vmatmul.mubr.f32.gmra.mxu0 %v243
        %v428 = vpop.f32.mrf.mxu0
        %v429 = vadd.f32 0.0, %v428
        %v430 = vpop.f32.mrf.mxu0
        %v431 = vadd.f32 0.0, %v430
        %432 = vmatprep.mubr.f32.mxu0 0.0
        %433 = vmatmul.mubr.f32.gmra.mxu0 %v246
        %v434 = vpop.f32.mrf.mxu0
        %v435 = vadd.f32 0.0, %v434
        %v436 = vpop.f32.mrf.mxu0
        %v437 = vadd.f32 0.0, %v436
        %438 = vmatprep.mubr.f32.mxu0 0.0
        %439 = vmatmul.mubr.f32.gmra.mxu0 %v249
        %v440 = vpop.f32.mrf.mxu0
        %v441 = vadd.f32 0.0, %v440
        %v442 = vpop.f32.mrf.mxu0
        %v443 = vadd.f32 0.0, %v442
        %444 = vmatprep.mubr.f32.mxu0 0.0
        %445 = vmatmul.mubr.f32.gmra.mxu0 %v252
        %v446 = vpop.f32.mrf.mxu0
        %v447 = vadd.f32 0.0, %v446
        %v448 = vpop.f32.mrf.mxu0
        %v449 = vadd.f32 0.0, %v448
        %450 = vmatprep.mubr.f32.mxu0 0.0
        %451 = vmatmul.mubr.f32.gmra.mxu0 %v255
        %v452 = vpop.f32.mrf.mxu0
        %v453 = vadd.f32 0.0, %v452
        %v454 = vpop.f32.mrf.mxu0
        %v455 = vadd.f32 0.0, %v454
        %456 = vmatprep.mubr.f32.mxu0 0.0
        %457 = vmatmul.mubr.f32.gmra.mxu0 %v258
        %v458 = vpop.f32.mrf.mxu0
        %v459 = vadd.f32 0.0, %v458
        %v460 = vpop.f32.mrf.mxu0
        %v461 = vadd.f32 0.0, %v460
        %462 = vmatprep.mubr.f32.mxu0 0.0
        %463 = vmatmul.mubr.f32.gmra.mxu0 %v261
        %v464 = vpop.f32.mrf.mxu0
        %v465 = vadd.f32 0.0, %v464
        %v466 = vpop.f32.mrf.mxu0
        %v467 = vadd.f32 0.0, %v466
        %468 = vmatprep.mubr.f32.mxu0 0.0
        %469 = vmatmul.mubr.f32.gmra.mxu0 %v264
        %v470 = vpop.f32.mrf.mxu0
        %v471 = vadd.f32 0.0, %v470
        %v472 = vpop.f32.mrf.mxu0
        %v473 = vadd.f32 0.0, %v472
        %474 = vmatprep.mubr.f32.mxu0 0.0
        %475 = vmatmul.mubr.f32.gmra.mxu0 %v267
        %v476 = vpop.f32.mrf.mxu0
        %v477 = vadd.f32 0.0, %v476
        %v478 = vpop.f32.mrf.mxu0
        %v479 = vadd.f32 0.0, %v478
        %480 = vmatprep.mubr.f32.mxu0 0.0
        %481 = vmatmul.mubr.f32.gmra.mxu0 %v270
        %v482 = vpop.f32.mrf.mxu0
        %v483 = vadd.f32 0.0, %v482
        %v484 = vpop.f32.mrf.mxu0
        %v485 = vadd.f32 0.0, %v484
        %486 = vmatprep.mubr.f32.mxu0 0.0
        %487 = vmatmul.mubr.f32.gmra.mxu0 %v273
        %v488 = vpop.f32.mrf.mxu0
        %v489 = vadd.f32 0.0, %v488
        %v490 = vpop.f32.mrf.mxu0
        %v491 = vadd.f32 0.0, %v490
        %492 = vmatprep.mubr.f32.mxu0 0.0
        %493 = vmatmul.mubr.f32.gmra.mxu0 %v276
        %v494 = vpop.f32.mrf.mxu0
        %v495 = vadd.f32 0.0, %v494
        %v496 = vpop.f32.mrf.mxu0
        %v497 = vadd.f32 0.0, %v496
        %498 = vmatprep.mubr.f32.mxu0 0.0
        %499 = vmatmul.mubr.f32.gmra.mxu0 %v279
        %v500 = vpop.f32.mrf.mxu0
        %v501 = vadd.f32 0.0, %v500
        %v502 = vpop.f32.mrf.mxu0
        %v503 = vadd.f32 0.0, %v502
        %504 = vmatprep.mubr.f32.mxu0 0.0
        %505 = vmatmul.mubr.f32.gmra.mxu0 %v282
        %v506 = vpop.f32.mrf.mxu0
        %v507 = vadd.f32 0.0, %v506
        %v508 = vpop.f32.mrf.mxu0
        %v509 = vadd.f32 0.0, %v508
        %510 = vmatprep.mubr.f32.mxu0 0.0
        %511 = vmatmul.mubr.f32.gmra.mxu0 %v285
        %v512 = vpop.f32.mrf.mxu0
        %v513 = vadd.f32 0.0, %v512
        %v514 = vpop.f32.mrf.mxu0
        %v515 = vadd.f32 0.0, %v514
        %516 = vmatprep.mubr.f32.mxu0 0.0
        %517 = vmatmul.mubr.f32.gmra.mxu0 %v288
        %v518 = vpop.f32.mrf.mxu0
        %v519 = vadd.f32 0.0, %v518
        %v520 = vpop.f32.mrf.mxu0
        %v521 = vadd.f32 0.0, %v520
        %522 = vmatprep.mubr.f32.mxu0 0.0
        %523 = vmatmul.mubr.f32.gmra.mxu0 %v291
        %v524 = vpop.f32.mrf.mxu0
        %v525 = vadd.f32 0.0, %v524
        %v526 = vpop.f32.mrf.mxu0
        %v527 = vadd.f32 0.0, %v526
        %528 = vmatprep.mubr.f32.mxu0 0.0
        %529 = vmatmul.mubr.f32.gmra.mxu0 %v294
        %v530 = vpop.f32.mrf.mxu0
        %v531 = vadd.f32 0.0, %v530
        %v532 = vpop.f32.mrf.mxu0
        %v533 = vadd.f32 0.0, %v532
        %534 = vmatprep.mubr.f32.mxu0 0.0
        %535 = vmatmul.mubr.f32.gmra.mxu0 %v297
        %v536 = vpop.f32.mrf.mxu0
        %v537 = vadd.f32 0.0, %v536
        %v538 = vpop.f32.mrf.mxu0
        %v539 = vadd.f32 0.0, %v538
        %540 = vmatprep.mubr.f32.mxu0 0.0
        %541 = vmatmul.mubr.f32.gmra.mxu0 %v300
        %v542 = vpop.f32.mrf.mxu0
        %v543 = vadd.f32 0.0, %v542
        %v544 = vpop.f32.mrf.mxu0
        %v545 = vadd.f32 0.0, %v544
        %546 = vmatprep.mubr.f32.mxu0 0.0
        %547 = vmatmul.mubr.f32.gmra.mxu0 %v303
        %v548 = vpop.f32.mrf.mxu0
        %v549 = vadd.f32 0.0, %v548
        %v550 = vpop.f32.mrf.mxu0
        %v551 = vadd.f32 0.0, %v550
        %552 = vmatprep.mubr.f32.mxu0 0.0
        %553 = vmatmul.mubr.f32.gmra.mxu0 %v306
        %v554 = vpop.f32.mrf.mxu0
        %v555 = vadd.f32 0.0, %v554
        %v556 = vpop.f32.mrf.mxu0
        %v557 = vadd.f32 0.0, %v556
        %558 = vmatprep.mubr.f32.mxu0 0.0
        %559 = vmatmul.mubr.f32.gmra.mxu0 %v309
        %v560 = vpop.f32.mrf.mxu0
        %v561 = vadd.f32 0.0, %v560
        %v562 = vpop.f32.mrf.mxu0
        %v563 = vadd.f32 0.0, %v562
        %564 = vmatprep.mubr.f32.mxu0 0.0
        %565 = vmatmul.mubr.f32.gmra.mxu0 %v312
        %v566 = vpop.f32.mrf.mxu0
        %v567 = vadd.f32 0.0, %v566
        %v568 = vpop.f32.mrf.mxu0
        %v569 = vadd.f32 0.0, %v568
        %570 = vdwg.mxu0
        %571 = vmatprep.subr.mxu0 0.0
        %572 = vmatpush1.msra.mxu0 0.0
        %573 = vmatprep.subr.mxu0 0.0
        %574 = vmatpush1.msra.mxu0 0.0
        %575 = vmatprep.subr.mxu0 0.0
        %576 = vmatpush1.msra.mxu0 0.0
        %577 = vmatprep.subr.mxu0 0.0
        %578 = vmatpush1.msra.mxu0 0.0
        %579 = vmatprep.subr.mxu0 0.0
        %580 = vmatpush1.msra.mxu0 0.0
        %581 = vmatprep.subr.mxu0 0.0
        %582 = vmatpush1.msra.mxu0 0.0
        %583 = vmatprep.subr.mxu0 0.0
        %584 = vmatpush1.msra.mxu0 0.0
        %585 = vmatprep.subr.mxu0 0.0
        %586 = vmatpush1.msra.mxu0 0.0
        %587 = vmatprep.subr.mxu0 0.0
        %588 = vmatpush1.msra.mxu0 0.0
        %589 = vmatprep.subr.mxu0 0.0
        %590 = vmatpush1.msra.mxu0 0.0
        %591 = vmatprep.subr.mxu0 0.0
        %592 = vmatpush1.msra.mxu0 0.0
        %593 = vmatprep.subr.mxu0 0.0
        %594 = vmatpush1.msra.mxu0 0.0
        %595 = vmatprep.subr.mxu0 0.0
        %596 = vmatpush1.msra.mxu0 %v216
        %597 = vmatprep.subr.mxu0 0.0
        %598 = vmatpush1.msra.mxu0 %v213
        %599 = vmatprep.subr.mxu0 0.0
        %600 = vmatpush1.msra.mxu0 %v210
        %601 = vmatprep.subr.mxu0 0.0
        %602 = vmatpush1.msra.mxu0 %v207
        %603 = vmatprep.subr.mxu0 0.0
        %604 = vmatpush2.msra.mxu0 0.0
        %605 = vmatprep.subr.mxu0 0.0
        %606 = vmatpush2.msra.mxu0 0.0
        %607 = vmatprep.subr.mxu0 0.0
        %608 = vmatpush2.msra.mxu0 0.0
        %609 = vmatprep.subr.mxu0 0.0
        %610 = vmatpush2.msra.mxu0 0.0
        %611 = vmatprep.subr.mxu0 0.0
        %612 = vmatpush2.msra.mxu0 0.0
        %613 = vmatprep.subr.mxu0 0.0
        %614 = vmatpush2.msra.mxu0 0.0
        %615 = vmatprep.subr.mxu0 0.0
        %616 = vmatpush2.msra.mxu0 0.0
        %617 = vmatprep.subr.mxu0 0.0
        %618 = vmatpush2.msra.mxu0 0.0
        %619 = vmatprep.subr.mxu0 0.0
        %620 = vmatpush2.msra.mxu0 0.0
        %621 = vmatprep.subr.mxu0 0.0
        %622 = vmatpush2.msra.mxu0 0.0
        %623 = vmatprep.subr.mxu0 0.0
        %624 = vmatpush2.msra.mxu0 0.0
        %625 = vmatprep.subr.mxu0 0.0
        %626 = vmatpush2.msra.mxu0 0.0
        %627 = vmatprep.subr.mxu0 0.0
        %628 = vmatpush2.msra.mxu0 0.0
        %629 = vmatprep.subr.mxu0 0.0
        %630 = vmatpush2.msra.mxu0 0.0
        %631 = vmatprep.subr.mxu0 0.0
        %632 = vmatpush2.msra.mxu0 0.0
        %633 = vmatprep.subr.mxu0 0.0
        %634 = vmatpush2.msra.mxu0 0.0
        %635 = vmatprep.mubr.f32.mxu0 0.0
        %636 = vmatmul.mubr.f32.gmra.mxu0 %v219
        %v637 = vpop.f32.mrf.mxu0
        %v638 = vadd.f32 0.0, %v637
        %v639 = vpop.f32.mrf.mxu0
        %640 = vmatprep.mubr.f32.mxu0 0.0
        %641 = vmatmul.mubr.f32.gmra.mxu0 %v222
        %v642 = vpop.f32.mrf.mxu0
        %v643 = vadd.f32 0.0, %v642
        %v644 = vpop.f32.mrf.mxu0
        %645 = vmatprep.mubr.f32.mxu0 0.0
        %646 = vmatmul.mubr.f32.gmra.mxu0 %v225
        %v647 = vpop.f32.mrf.mxu0
        %v648 = vadd.f32 0.0, %v647
        %v649 = vpop.f32.mrf.mxu0
        %650 = vmatprep.mubr.f32.mxu0 0.0
        %651 = vmatmul.mubr.f32.gmra.mxu0 %v228
        %v652 = vpop.f32.mrf.mxu0
        %v653 = vadd.f32 0.0, %v652
        %v654 = vpop.f32.mrf.mxu0
        %655 = vmatprep.mubr.f32.mxu0 0.0
        %656 = vmatmul.mubr.f32.gmra.mxu0 %v231
        %v657 = vpop.f32.mrf.mxu0
        %v658 = vadd.f32 0.0, %v657
        %v659 = vpop.f32.mrf.mxu0
        %660 = vmatprep.mubr.f32.mxu0 0.0
        %661 = vmatmul.mubr.f32.gmra.mxu0 %v234
        %v662 = vpop.f32.mrf.mxu0
        %v663 = vadd.f32 0.0, %v662
        %v664 = vpop.f32.mrf.mxu0
        %665 = vmatprep.mubr.f32.mxu0 0.0
        %666 = vmatmul.mubr.f32.gmra.mxu0 %v237
        %v667 = vpop.f32.mrf.mxu0
        %v668 = vadd.f32 0.0, %v667
        %v669 = vpop.f32.mrf.mxu0
        %670 = vmatprep.mubr.f32.mxu0 0.0
        %671 = vmatmul.mubr.f32.gmra.mxu0 %v240
        %v672 = vpop.f32.mrf.mxu0
        %v673 = vadd.f32 0.0, %v672
        %v674 = vpop.f32.mrf.mxu0
        %675 = vmatprep.mubr.f32.mxu0 0.0
        %676 = vmatmul.mubr.f32.gmra.mxu0 %v243
        %v677 = vpop.f32.mrf.mxu0
        %v678 = vadd.f32 0.0, %v677
        %v679 = vpop.f32.mrf.mxu0
        %680 = vmatprep.mubr.f32.mxu0 0.0
        %681 = vmatmul.mubr.f32.gmra.mxu0 %v246
        %v682 = vpop.f32.mrf.mxu0
        %v683 = vadd.f32 0.0, %v682
        %v684 = vpop.f32.mrf.mxu0
        %685 = vmatprep.mubr.f32.mxu0 0.0
        %686 = vmatmul.mubr.f32.gmra.mxu0 %v249
        %v687 = vpop.f32.mrf.mxu0
        %v688 = vadd.f32 0.0, %v687
        %v689 = vpop.f32.mrf.mxu0
        %690 = vmatprep.mubr.f32.mxu0 0.0
        %691 = vmatmul.mubr.f32.gmra.mxu0 %v252
        %v692 = vpop.f32.mrf.mxu0
        %v693 = vadd.f32 0.0, %v692
        %v694 = vpop.f32.mrf.mxu0
        %695 = vmatprep.mubr.f32.mxu0 0.0
        %696 = vmatmul.mubr.f32.gmra.mxu0 %v255
        %v697 = vpop.f32.mrf.mxu0
        %v698 = vadd.f32 0.0, %v697
        %v699 = vpop.f32.mrf.mxu0
        %700 = vmatprep.mubr.f32.mxu0 0.0
        %701 = vmatmul.mubr.f32.gmra.mxu0 %v258
        %v702 = vpop.f32.mrf.mxu0
        %v703 = vadd.f32 0.0, %v702
        %v704 = vpop.f32.mrf.mxu0
        %705 = vmatprep.mubr.f32.mxu0 0.0
        %706 = vmatmul.mubr.f32.gmra.mxu0 %v261
        %v707 = vpop.f32.mrf.mxu0
        %v708 = vadd.f32 0.0, %v707
        %v709 = vpop.f32.mrf.mxu0
        %710 = vmatprep.mubr.f32.mxu0 0.0
        %711 = vmatmul.mubr.f32.gmra.mxu0 %v264
        %v712 = vpop.f32.mrf.mxu0
        %v713 = vadd.f32 0.0, %v712
        %v714 = vpop.f32.mrf.mxu0
        %715 = vmatprep.mubr.f32.mxu0 0.0
        %716 = vmatmul.mubr.f32.gmra.mxu0 %v267
        %v717 = vpop.f32.mrf.mxu0
        %v718 = vadd.f32 0.0, %v717
        %v719 = vpop.f32.mrf.mxu0
        %720 = vmatprep.mubr.f32.mxu0 0.0
        %721 = vmatmul.mubr.f32.gmra.mxu0 %v270
        %v722 = vpop.f32.mrf.mxu0
        %v723 = vadd.f32 0.0, %v722
        %v724 = vpop.f32.mrf.mxu0
        %725 = vmatprep.mubr.f32.mxu0 0.0
        %726 = vmatmul.mubr.f32.gmra.mxu0 %v273
        %v727 = vpop.f32.mrf.mxu0
        %v728 = vadd.f32 0.0, %v727
        %v729 = vpop.f32.mrf.mxu0
        %730 = vmatprep.mubr.f32.mxu0 0.0
        %731 = vmatmul.mubr.f32.gmra.mxu0 %v276
        %v732 = vpop.f32.mrf.mxu0
        %v733 = vadd.f32 0.0, %v732
        %v734 = vpop.f32.mrf.mxu0
        %735 = vmatprep.mubr.f32.mxu0 0.0
        %736 = vmatmul.mubr.f32.gmra.mxu0 %v279
        %v737 = vpop.f32.mrf.mxu0
        %v738 = vadd.f32 0.0, %v737
        %v739 = vpop.f32.mrf.mxu0
        %740 = vmatprep.mubr.f32.mxu0 0.0
        %741 = vmatmul.mubr.f32.gmra.mxu0 %v282
        %v742 = vpop.f32.mrf.mxu0
        %v743 = vadd.f32 0.0, %v742
        %v744 = vpop.f32.mrf.mxu0
        %745 = vmatprep.mubr.f32.mxu0 0.0
        %746 = vmatmul.mubr.f32.gmra.mxu0 %v285
        %v747 = vpop.f32.mrf.mxu0
        %v748 = vadd.f32 0.0, %v747
        %v749 = vpop.f32.mrf.mxu0
        %750 = vmatprep.mubr.f32.mxu0 0.0
        %751 = vmatmul.mubr.f32.gmra.mxu0 %v288
        %v752 = vpop.f32.mrf.mxu0
        %v753 = vadd.f32 0.0, %v752
        %v754 = vpop.f32.mrf.mxu0
        %755 = vmatprep.mubr.f32.mxu0 0.0
        %756 = vmatmul.mubr.f32.gmra.mxu0 %v291
        %v757 = vpop.f32.mrf.mxu0
        %v758 = vadd.f32 0.0, %v757
        %v759 = vpop.f32.mrf.mxu0
        %760 = vmatprep.mubr.f32.mxu0 0.0
        %761 = vmatmul.mubr.f32.gmra.mxu0 %v294
        %v762 = vpop.f32.mrf.mxu0
        %v763 = vadd.f32 0.0, %v762
        %v764 = vpop.f32.mrf.mxu0
        %765 = vmatprep.mubr.f32.mxu0 0.0
        %766 = vmatmul.mubr.f32.gmra.mxu0 %v297
        %v767 = vpop.f32.mrf.mxu0
        %v768 = vadd.f32 0.0, %v767
        %v769 = vpop.f32.mrf.mxu0
        %770 = vmatprep.mubr.f32.mxu0 0.0
        %771 = vmatmul.mubr.f32.gmra.mxu0 %v300
        %v772 = vpop.f32.mrf.mxu0
        %v773 = vadd.f32 0.0, %v772
        %v774 = vpop.f32.mrf.mxu0
        %775 = vmatprep.mubr.f32.mxu0 0.0
        %776 = vmatmul.mubr.f32.gmra.mxu0 %v303
        %v777 = vpop.f32.mrf.mxu0
        %v778 = vadd.f32 0.0, %v777
        %v779 = vpop.f32.mrf.mxu0
        %780 = vmatprep.mubr.f32.mxu0 0.0
        %781 = vmatmul.mubr.f32.gmra.mxu0 %v306
        %v782 = vpop.f32.mrf.mxu0
        %v783 = vadd.f32 0.0, %v782
        %v784 = vpop.f32.mrf.mxu0
        %785 = vmatprep.mubr.f32.mxu0 0.0
        %786 = vmatmul.mubr.f32.gmra.mxu0 %v309
        %v787 = vpop.f32.mrf.mxu0
        %v788 = vadd.f32 0.0, %v787
        %v789 = vpop.f32.mrf.mxu0
        %790 = vmatprep.mubr.f32.mxu0 0.0
        %791 = vmatmul.mubr.f32.gmra.mxu0 %v312
        %v792 = vpop.f32.mrf.mxu0
        %v793 = vadd.f32 0.0, %v792
        %v794 = vpop.f32.mrf.mxu0
        %795 = vdwg.mxu0
        %796 = vst [vmem:[%s161] sm:$0xff] %v381
        %797 = vst [vmem:[%s161 + $0x8] sm:$0xff] %v383
        %798 = vst [vmem:[%s161 + $0x10] sm:$0xff] %v638
        %799 = vst [vmem:[%s161 + $0x18] sm:$0xff] %v387
        %800 = vst [vmem:[%s161 + $0x20] sm:$0xff] %v389
        %801 = vst [vmem:[%s161 + $0x28] sm:$0xff] %v643
        %802 = vst [vmem:[%s161 + $0x30] sm:$0xff] %v393
        %803 = vst [vmem:[%s161 + $0x38] sm:$0xff] %v395
        %804 = vst [vmem:[%s161 + $0x40] sm:$0xff] %v648
        %805 = vst [vmem:[%s161 + $0x48] sm:$0xff] %v399
        %806 = vst [vmem:[%s161 + $0x50] sm:$0xff] %v401
        %807 = vst [vmem:[%s161 + $0x58] sm:$0xff] %v653
        %808 = vst [vmem:[%s161 + $0x60] sm:$0xff] %v405
        %809 = vst [vmem:[%s161 + $0x68] sm:$0xff] %v407
        %810 = vst [vmem:[%s161 + $0x70] sm:$0xff] %v658
        %811 = vst [vmem:[%s161 + $0x78] sm:$0xff] %v411
        %812 = vst [vmem:[%s161 + $0x80] sm:$0xff] %v413
        %813 = vst [vmem:[%s161 + $0x88] sm:$0xff] %v663
        %814 = vst [vmem:[%s161 + $0x90] sm:$0xff] %v417
        %815 = vst [vmem:[%s161 + $0x98] sm:$0xff] %v419
        %816 = vst [vmem:[%s161 + $0xa0] sm:$0xff] %v668
        %817 = vst [vmem:[%s161 + $0xa8] sm:$0xff] %v423
        %818 = vst [vmem:[%s161 + $0xb0] sm:$0xff] %v425
        %819 = vst [vmem:[%s161 + $0xb8] sm:$0xff] %v673
        %820 = vst [vmem:[%s161 + $0xc0] sm:$0xff] %v429
        %821 = vst [vmem:[%s161 + $0xc8] sm:$0xff] %v431
        %822 = vst [vmem:[%s161 + $0xd0] sm:$0xff] %v678
        %823 = vst [vmem:[%s161 + $0xd8] sm:$0xff] %v435
        %824 = vst [vmem:[%s161 + $0xe0] sm:$0xff] %v437
        %825 = vst [vmem:[%s161 + $0xe8] sm:$0xff] %v683
        %826 = vst [vmem:[%s161 + $0xf0] sm:$0xff] %v441
        %827 = vst [vmem:[%s161 + $0xf8] sm:$0xff] %v443
        %828 = vst [vmem:[%s161 + $0x100] sm:$0xff] %v688
        %829 = vst [vmem:[%s161 + $0x108] sm:$0xff] %v447
        %830 = vst [vmem:[%s161 + $0x110] sm:$0xff] %v449
        %831 = vst [vmem:[%s161 + $0x118] sm:$0xff] %v693
        %832 = vst [vmem:[%s161 + $0x120] sm:$0xff] %v453
        %833 = vst [vmem:[%s161 + $0x128] sm:$0xff] %v455
        %834 = vst [vmem:[%s161 + $0x130] sm:$0xff] %v698
        %835 = vst [vmem:[%s161 + $0x138] sm:$0xff] %v459
        %836 = vst [vmem:[%s161 + $0x140] sm:$0xff] %v461
        %837 = vst [vmem:[%s161 + $0x148] sm:$0xff] %v703
        %838 = vst [vmem:[%s161 + $0x150] sm:$0xff] %v465
        %839 = vst [vmem:[%s161 + $0x158] sm:$0xff] %v467
        %840 = vst [vmem:[%s161 + $0x160] sm:$0xff] %v708
        %841 = vst [vmem:[%s161 + $0x168] sm:$0xff] %v471
        %842 = vst [vmem:[%s161 + $0x170] sm:$0xff] %v473
        %843 = vst [vmem:[%s161 + $0x178] sm:$0xff] %v713
        %844 = vst [vmem:[%s161 + $0x180] sm:$0xff] %v477
        %845 = vst [vmem:[%s161 + $0x188] sm:$0xff] %v479
        %846 = vst [vmem:[%s161 + $0x190] sm:$0xff] %v718
        %847 = vst [vmem:[%s161 + $0x198] sm:$0xff] %v483
        %848 = vst [vmem:[%s161 + $0x1a0] sm:$0xff] %v485
        %849 = vst [vmem:[%s161 + $0x1a8] sm:$0xff] %v723
        %850 = vst [vmem:[%s161 + $0x1b0] sm:$0xff] %v489
        %851 = vst [vmem:[%s161 + $0x1b8] sm:$0xff] %v491
        %852 = vst [vmem:[%s161 + $0x1c0] sm:$0xff] %v728
        %853 = vst [vmem:[%s161 + $0x1c8] sm:$0xff] %v495
        %854 = vst [vmem:[%s161 + $0x1d0] sm:$0xff] %v497
        %855 = vst [vmem:[%s161 + $0x1d8] sm:$0xff] %v733
        %856 = vst [vmem:[%s161 + $0x1e0] sm:$0xff] %v501
        %857 = vst [vmem:[%s161 + $0x1e8] sm:$0xff] %v503
        %858 = vst [vmem:[%s161 + $0x1f0] sm:$0xff] %v738
        %859 = vst [vmem:[%s161 + $0x1f8] sm:$0xff] %v507
        %860 = vst [vmem:[%s161 + $0x200] sm:$0xff] %v509
        %861 = vst [vmem:[%s161 + $0x208] sm:$0xff] %v743
        %862 = vst [vmem:[%s161 + $0x210] sm:$0xff] %v513
        %863 = vst [vmem:[%s161 + $0x218] sm:$0xff] %v515
        %864 = vst [vmem:[%s161 + $0x220] sm:$0xff] %v748
        %865 = vst [vmem:[%s161 + $0x228] sm:$0xff] %v519
        %866 = vst [vmem:[%s161 + $0x230] sm:$0xff] %v521
        %867 = vst [vmem:[%s161 + $0x238] sm:$0xff] %v753
        %868 = vst [vmem:[%s161 + $0x240] sm:$0xff] %v525
        %869 = vst [vmem:[%s161 + $0x248] sm:$0xff] %v527
        %870 = vst [vmem:[%s161 + $0x250] sm:$0xff] %v758
        %871 = vst [vmem:[%s161 + $0x258] sm:$0xff] %v531
        %872 = vst [vmem:[%s161 + $0x260] sm:$0xff] %v533
        %873 = vst [vmem:[%s161 + $0x268] sm:$0xff] %v763
        %874 = vst [vmem:[%s161 + $0x270] sm:$0xff] %v537
        %875 = vst [vmem:[%s161 + $0x278] sm:$0xff] %v539
        %876 = vst [vmem:[%s161 + $0x280] sm:$0xff] %v768
        %877 = vst [vmem:[%s161 + $0x288] sm:$0xff] %v543
        %878 = vst [vmem:[%s161 + $0x290] sm:$0xff] %v545
        %879 = vst [vmem:[%s161 + $0x298] sm:$0xff] %v773
        %880 = vst [vmem:[%s161 + $0x2a0] sm:$0xff] %v549
        %881 = vst [vmem:[%s161 + $0x2a8] sm:$0xff] %v551
        %882 = vst [vmem:[%s161 + $0x2b0] sm:$0xff] %v778
        %883 = vst [vmem:[%s161 + $0x2b8] sm:$0xff] %v555
        %884 = vst [vmem:[%s161 + $0x2c0] sm:$0xff] %v557
        %885 = vst [vmem:[%s161 + $0x2c8] sm:$0xff] %v783
        %886 = vst [vmem:[%s161 + $0x2d0] sm:$0xff] %v561
        %887 = vst [vmem:[%s161 + $0x2d8] sm:$0xff] %v563
        %888 = vst [vmem:[%s161 + $0x2e0] sm:$0xff] %v788
        %889 = vst [vmem:[%s161 + $0x2e8] sm:$0xff] %v567
        %890 = vst [vmem:[%s161 + $0x2f0] sm:$0xff] %v569
        %891 = vst [vmem:[%s161 + $0x2f8] sm:$0xff] %v793
        %s892 = sand.u32 %s87, 1
        %s893 = scalar_lea.sflag [#allocation3], %s892
        %s894 = sand.u32 %s87, 1
        %s895 = smul.addr %s894, 768
        %s896 = scalar_lea.vmem [#allocation2], %s895
        // Predicated region
        $region29: #{tpu_custom_call.1} parent=27 // pred_check
          %p897 = pneg %p97
        $region30: #{tpu_custom_call.1} parent=27 // pred_check_branch
          %899 = sbr.rel (%p897) target = $region32
        $region31: #{tpu_custom_call.1} parent=27 // pred_region
          %s900 = smul.u32 32, %s21
          %s902 = ssub.s32 12288, 12288
          %903 = vsyncadd %s893, %s902
          %s904 = smul.addr %s900, 3
          %s905 = smul.addr %s20, 96
          %s906 = sadd.s32 %s904, %s905
          %s907 = smul.addr %s906, 128
          %s908 = scalar_lea.hbm %s2, %s907
          %s909 = sshll.u32 %s896, 4
          %s910 = int_to_ptr.vmem [resolvable:$true] %s909
          %915 = dma.vmem_to_hbm [thread:$0]  %s910, 12288, %s908, %s893, 384, 384, 24
        $region32: #{tpu_custom_call.1} parent=27 // pred_fallthru
          _
      $region28: #{tpu_custom_call.1} parent=5 // pred_fallthru
        _
      %p916 = scmp.le.s32.totalorder 2, %s11
      // Predicated region
      $region33: #{tpu_custom_call.1} parent=5 // pred_check
        %p917 = pneg %p916
      $region34: #{tpu_custom_call.1} parent=5 // pred_check_branch
        %919 = sbr.rel (%p917) target = $region36
      $region35: #{tpu_custom_call.1} parent=5 // pred_region
        %s920 = ssub.s32 %s11, 2
        // Predicated region
        $region37: #{tpu_custom_call.1} parent=35 // pred_check
          %p921 = pneg %p103
        $region38: #{tpu_custom_call.1} parent=35 // pred_check_branch
          %923 = sbr.rel (%p921) target = $region40
        $region39: #{tpu_custom_call.1} parent=35 // pred_region
          %s924 = sand.u32 %s88, 1
          %s925 = scalar_lea.sflag [#allocation3], %s924
          %s926 = sand.u32 %s88, 1
          %s927 = smul.addr %s926, 768
          %s928 = scalar_lea.vmem [#allocation2], %s927
          %929 = dma.done %s925, 12288
        $region40: #{tpu_custom_call.1} parent=35 // pred_fallthru
          _
      $region36: #{tpu_custom_call.1} parent=5 // pred_fallthru
        _
    $region6: #{tpu_custom_call.1} parent=1 // loop_footer
      %s15 = sadd.s32 1, %s11
    $region7: #{tpu_custom_call.1} parent=1 // loop_footer_branch
      %10 = sbr.rel target = $region3
    $region8: #{tpu_custom_call.1} parent=1 // loop_exit
      _
    %930 = vsyncpa [#allocation3], 1
    %s931 = scalar_lea.sflag [#allocation3], 1
    %932 = vsyncpa %s931, 1

</llo_original>
